<compile_context>
chip_gen: v7x
topology: tpu7x:2x2x1
jax: 0.10.0
libtpu: 0.0.40
codegen_flags: <defaults>
</compile_context>

<pallas_src>
import functools

import jax
import jax.numpy as jnp
from jax import lax
from jax.experimental import pallas as pl
from jax.experimental.pallas import tpu as pltpu

LANES = 128
CHUNK_R = 512                            # rows per in-kernel compute chunk (256 KiB f32)
MAX_TILE_R = 8192                        # rows per DMA block (4 MiB per f32 input)
INPUT_VMEM_BUDGET = 24 * 1024 * 1024     # double-buffered input blocks
VMEM_LIMIT_BYTES = 40 * 1024 * 1024      # < v7x 64 MiB/TC; fine on v5e/v6e (128 MiB)


def _round_up(x, m):
    return ((x + m - 1) // m) * m


def _tensorcores_per_chip():
    """2 on v7x (two TensorCores per chip), else 1 (v5e / v6e)."""
    try:
        kind = jax.devices()[0].device_kind.lower()
    except Exception:
        return 1
    return 2 if ("v7" in kind or "7x" in kind) else 1


def _mask_l1_kernel(pred_ref, gt_ref, mask_ref, num_ref, den_ref,
                    acc_n, acc_d, *, tile_r, chunk_r, total_rows,
                    tiles_per_core):
    c = pl.program_id(0)          # core-parallel axis
    i = pl.program_id(1)          # sequential reduction axis

    @pl.when(i == 0)
    def _init():
        acc_n[...] = jnp.zeros_like(acc_n)
        acc_d[...] = jnp.zeros_like(acc_d)

    # Unclamped row offset of this block; any rows the (possibly clamped)
    # DMA fetched beyond `total_rows` are zeroed by the iota mask below, so
    # a fully out-of-range block contributes exactly zero.
    block_row0 = (c * tiles_per_core + i) * tile_r
    row_iota = lax.broadcasted_iota(jnp.int32, (chunk_r, LANES), 0)  # hoisted

    def body(j, carry):
        an, ad = carry
        r0 = pl.multiple_of(j * chunk_r, chunk_r)
        p = pred_ref[pl.ds(r0, chunk_r), :].astype(jnp.float32)
        g = gt_ref[pl.ds(r0, chunk_r), :].astype(jnp.float32)
        m = mask_ref[pl.ds(r0, chunk_r), :].astype(jnp.float32)
        valid = (block_row0 + r0 + row_iota) < total_rows
        term = jnp.where(valid, jnp.abs(p - g) * m, 0.0)
        mval = jnp.where(valid, m, 0.0)
        # (chunk_r,128) -> (chunk_r//8, 8, 128) is layout-preserving; the
        # axis-0 sum is pure vreg-wise VPU adds (no XLU), and the VPU has
        # plenty of slack under the HBM roofline.
        an = an + term.reshape(chunk_r // 8, 8, LANES).sum(axis=0)
        ad = ad + mval.reshape(chunk_r // 8, 8, LANES).sum(axis=0)
        return an, ad

    zero = jnp.zeros((8, LANES), jnp.float32)
    an, ad = lax.fori_loop(0, tile_r // chunk_r, body, (zero, zero))
    acc_n[...] += an
    acc_d[...] += ad

    @pl.when(i == tiles_per_core - 1)
    def _finalize():
        num_ref[...] = acc_n[...].reshape(1, 8, LANES)
        den_ref[...] = acc_d[...].reshape(1, 8, LANES)


def mask_l1_loss(pred, gt, mask, eps=1e-6, *, max_tile_r=MAX_TILE_R):
    """Masked L1 loss with exact PyTorch MaskL1Loss semantics."""
    full_shape = jnp.broadcast_shapes(pred.shape, gt.shape, mask.shape)
    mask_is_full = tuple(mask.shape) == tuple(full_shape)

    def prep(x):
        if x.dtype == jnp.bool_:
            x = x.astype(jnp.int8)    # 1 B/elem in HBM; f32 cast happens in-kernel
        if tuple(x.shape) != tuple(full_shape):
            # TODO(synk): for the common (N,1,H,W) mask this materializes a
            # C-times-larger mask; a channel grid axis whose mask index_map
            # ignores the channel index would reuse one mask tile instead.
            x = jnp.broadcast_to(x, full_shape)
        return x.reshape(-1)          # keep native dtype

    pred_f, gt_f, mask_f = prep(pred), prep(gt), prep(mask)
    n = int(pred_f.shape[0])
    rows = n // LANES
    rem = n - rows * LANES

    def _jnp_term(p, g, m):
        p = p.astype(jnp.float32)
        g = g.astype(jnp.float32)
        m = m.astype(jnp.float32)
        return jnp.sum(jnp.abs(p - g) * m), jnp.sum(m)

    if rows == 0:
        # Fewer than 128 elements: not worth a kernel launch.
        num, den_stream = _jnp_term(pred_f, gt_f, mask_f)
    else:
        n_main = rows * LANES

        def main2d(x):
            # Common case (rem == 0): pure metadata reshape, no copy / no pad.
            if rem:
                x = x[:n_main]
            return x.reshape(rows, LANES)

        pred2, gt2, mask2 = main2d(pred_f), main2d(gt_f), main2d(mask_f)

        bytes_per_row = LANES * (pred2.dtype.itemsize + gt2.dtype.itemsize
                                 + mask2.dtype.itemsize)
        budget_rows = max(CHUNK_R, INPUT_VMEM_BUDGET // (2 * bytes_per_row))
        tile_r = min(int(max_tile_r), int(budget_rows), _round_up(rows, CHUNK_R))
        tile_r = max(CHUNK_R, (tile_r // CHUNK_R) * CHUNK_R)  # mult of 512 (and 32)

        num_tiles = pl.cdiv(rows, tile_r)
        ncores = _tensorcores_per_chip()
        grid_cores = ncores if num_tiles >= 2 else 1
        tiles_per_core = pl.cdiv(num_tiles, grid_cores)

        if grid_cores * tiles_per_core == num_tiles:
            def in_map(c, i):
                return (c * tiles_per_core + i, 0)
        else:
            # Uneven 2-core split only: clamp so the block index stays in
            # range; the kernel fully masks the re-fetched block via the
            # unclamped row offset (invariant: num_tiles * tile_r >= rows).
            def in_map(c, i):
                return (jnp.minimum(c * tiles_per_core + i, num_tiles - 1), 0)

        in_spec = pl.BlockSpec((tile_r, LANES), in_map)
        out_spec = pl.BlockSpec((1, 8, LANES), lambda c, i: (c, 0, 0))

        kernel = functools.partial(
            _mask_l1_kernel, tile_r=tile_r, chunk_r=CHUNK_R,
            total_rows=rows, tiles_per_core=tiles_per_core)

        bytes_accessed = (pred2.size * pred2.dtype.itemsize
                          + gt2.size * gt2.dtype.itemsize
                          + mask2.size * mask2.dtype.itemsize
                          + 2 * grid_cores * 8 * LANES * 4)
        cost = pl.CostEstimate(flops=5 * n_main, transcendentals=0,
                               bytes_accessed=bytes_accessed)

        num_p, den_p = pl.pallas_call(
            kernel,
            out_shape=(
                jax.ShapeDtypeStruct((grid_cores, 8, LANES), jnp.float32),
                jax.ShapeDtypeStruct((grid_cores, 8, LANES), jnp.float32),
            ),
            grid_spec=pltpu.PrefetchScalarGridSpec(
                num_scalar_prefetch=0,
                grid=(grid_cores, tiles_per_core),
                in_specs=[in_spec, in_spec, in_spec],
                out_specs=(out_spec, out_spec),
                scratch_shapes=[
                    pltpu.VMEM((8, LANES), jnp.float32),
                    pltpu.VMEM((8, LANES), jnp.float32),
                ],
            ),
            compiler_params=pltpu.CompilerParams(
                # TODO(synk): on v7x, pltpu.CORE_PARALLEL on axis 0 would
                # guarantee the 2-TensorCore split; plain "parallel" is the
                # documented megacore path and is kept for portability.
                dimension_semantics=("parallel", "arbitrary"),
                vmem_limit_bytes=VMEM_LIMIT_BYTES,
            ),
            cost_estimate=cost,
        )(pred2, gt2, mask2)

        num = jnp.sum(num_p)
        den_stream = jnp.sum(den_p)

        if rem:
            # Tiny (<128 elem) ragged tail handled in plain jnp.
            tail_num, tail_den = _jnp_term(pred_f[n_main:], gt_f[n_main:],
                                           mask_f[n_main:])
            num = num + tail_num
            den_stream = den_stream + tail_den

    # PyTorch's mask.sum() is over the ORIGINAL (unbroadcast) mask.  When the
    # mask already has the full shape, the fused in-kernel sum is used (no
    # second HBM pass); otherwise sum the small original mask here.
    if mask_is_full:
        den = den_stream
    else:
        den = jnp.sum(mask.astype(jnp.float32))

    return (num / (den + jnp.float32(eps))).astype(jnp.float32)


if __name__ == "__main__":
    key = jax.random.PRNGKey(0)
    k1, k2, k3 = jax.random.split(key, 3)
    eps = 1e-6

    # 1) Small NCHW shapes consistent with the detection-loss usage.
    pred = jax.random.uniform(k1, (2, 4, 16, 16), dtype=jnp.float32)
    gt = jax.random.uniform(k2, (2, 4, 16, 16), dtype=jnp.float32)
    mask = (jax.random.uniform(k3, (2, 4, 16, 16)) > 0.5).astype(jnp.float32)
    loss = mask_l1_loss(pred, gt, mask, eps)
    jax.block_until_ready(loss)
    ref = (jnp.abs(pred - gt) * mask).sum() / (mask.sum() + eps)
    assert jnp.allclose(loss, ref, rtol=1e-5, atol=1e-6), (loss, ref)

    # 2) Ragged size (n % 128 != 0) + bool mask broadcast over channels.
    #    PyTorch semantics: numerator broadcasts, denominator sums the
    #    ORIGINAL (N,1,H,W) mask.
    p2 = jax.random.uniform(k1, (2, 3, 13, 16), dtype=jnp.float32)
    g2 = jax.random.uniform(k2, (2, 3, 13, 16), dtype=jnp.float32)
    m2 = jax.random.uniform(k3, (2, 1, 13, 16)) > 0.5          # bool mask
    loss2 = mask_l1_loss(p2, g2, m2, eps)
    jax.block_until_ready(loss2)
    m2f = m2.astype(jnp.float32)
    ref2 = (jnp.abs(p2 - g2) * m2f).sum() / (m2f.sum() + eps)
    assert jnp.allclose(loss2, ref2, rtol=1e-5, atol=1e-6), (loss2, ref2)

    # 3) Multi-tile path (several grid steps, accumulator init/finalize and,
    #    on 2-TC chips, the uneven-split clamp) via a reduced tile cap.
    p3 = jax.random.uniform(k1, (2, 4, 160, 128), dtype=jnp.float32)
    g3 = jax.random.uniform(k2, (2, 4, 160, 128), dtype=jnp.float32)
    m3 = (jax.random.uniform(k3, (2, 4, 160, 128)) > 0.3).astype(jnp.float32)
    loss3 = mask_l1_loss(p3, g3, m3, eps, max_tile_r=512)
    jax.block_until_ready(loss3)
    ref3 = (jnp.abs(p3 - g3) * m3).sum() / (m3.sum() + eps)
    assert jnp.allclose(loss3, ref3, rtol=1e-4, atol=1e-6), (loss3, ref3)

    print("KERNEL_OK")
</pallas_src>

<mosaic_0001>
module attributes {stable_mosaic.version = 11 : i64} {
  func.func @_mask_l1_kernel(%arg0: i32, %arg1: i32, %arg2: memref<512x128xf32, #tpu.memory_space<vmem>>, %arg3: memref<512x128xf32, #tpu.memory_space<vmem>>, %arg4: memref<512x128xf32, #tpu.memory_space<vmem>>, %arg5: memref<1x8x128xf32, #tpu.memory_space<vmem>>, %arg6: memref<1x8x128xf32, #tpu.memory_space<vmem>>, %arg7: memref<8x128xf32, #tpu.memory_space<vmem>>, %arg8: memref<8x128xf32, #tpu.memory_space<vmem>>) attributes {dimension_semantics = [#tpu.dimension_semantics<parallel>, #tpu.dimension_semantics<arbitrary>], iteration_bounds = array<i64: 1, 1>, scalar_prefetch = 0 : i64, scratch_operands = 2 : i64, tpu.core_type = #tpu.core_type<tc>, window_params = [{transform_indices = @transform_0, window_bounds = array<i64: 512, 128>}, {transform_indices = @transform_1, window_bounds = array<i64: 512, 128>}, {transform_indices = @transform_2, window_bounds = array<i64: 512, 128>}, {transform_indices = @transform_3, window_bounds = array<i64: 1, 8, 128>}, {transform_indices = @transform_4, window_bounds = array<i64: 1, 8, 128>}]} {
    %c0_i32 = arith.constant 0 : i32
    %0 = arith.cmpi eq, %arg1, %c0_i32 : i32
    %1 = arith.extui %0 : i1 to i32
    %c0_i32_0 = arith.constant 0 : i32
    %2 = arith.cmpi ne, %1, %c0_i32_0 : i32
    scf.if %2 {
      %cst_20 = arith.constant 0.000000e+00 : f32
      %43 = vector.broadcast %cst_20 : f32 to vector<8x128xf32>
      %c0_21 = arith.constant 0 : index
      %c0_22 = arith.constant 0 : index
      %44 = vector.load %arg7[%c0_21, %c0_22] : memref<8x128xf32, #tpu.memory_space<vmem>>, vector<8x128xf32>
      tpu.vector_store %arg7[%c0_21, %c0_22], %43 {strides = array<i32>} : memref<8x128xf32, #tpu.memory_space<vmem>>, vector<8x128xf32>,
      %cst_23 = arith.constant 0.000000e+00 : f32
      %45 = vector.broadcast %cst_23 : f32 to vector<8x128xf32>
      %c0_24 = arith.constant 0 : index
      %c0_25 = arith.constant 0 : index
      %46 = vector.load %arg8[%c0_24, %c0_25] : memref<8x128xf32, #tpu.memory_space<vmem>>, vector<8x128xf32>
      tpu.vector_store %arg8[%c0_24, %c0_25], %45 {strides = array<i32>} : memref<8x128xf32, #tpu.memory_space<vmem>>, vector<8x128xf32>,
    } else {
    }
    %c1_i32 = arith.constant 1 : i32
    %3 = arith.muli %arg0, %c1_i32 : i32
    %4 = arith.addi %3, %arg1 : i32
    %c512_i32 = arith.constant 512 : i32
    %5 = arith.muli %4, %c512_i32 : i32
    %6 = tpu.iota {dimensions = array<i32: 0>} : vector<512x128xi32>
    %cst = arith.constant 0.000000e+00 : f32
    %7 = vector.broadcast %cst : f32 to vector<8x128xf32>
    %c0_i32_1 = arith.constant 0 : i32
    %c512_i32_2 = arith.constant 512 : i32
    %8 = arith.muli %c0_i32_1, %c512_i32_2 : i32
    %9 = tpu.assume_multiple %8, 512 : i32
    %10 = arith.index_cast %9 : i32 to index
    %c0 = arith.constant 0 : index
    %11 = vector.load %arg2[%10, %c0] : memref<512x128xf32, #tpu.memory_space<vmem>>, vector<512x128xf32>
    %12 = arith.index_cast %9 : i32 to index
    %c0_3 = arith.constant 0 : index
    %13 = vector.load %arg3[%12, %c0_3] : memref<512x128xf32, #tpu.memory_space<vmem>>, vector<512x128xf32>
    %14 = arith.index_cast %9 : i32 to index
    %c0_4 = arith.constant 0 : index
    %15 = vector.load %arg4[%14, %c0_4] : memref<512x128xf32, #tpu.memory_space<vmem>>, vector<512x128xf32>
    %16 = arith.addi %5, %9 : i32
    %17 = vector.broadcast %16 : i32 to vector<512x128xi32>
    %18 = arith.addi %17, %6 : vector<512x128xi32>
    %c16_i32 = arith.constant 16 : i32
    %19 = vector.broadcast %c16_i32 : i32 to vector<512x128xi32>
    %20 = arith.cmpi slt, %18, %19 : vector<512x128xi32>
    %21 = arith.subf %11, %13 : vector<512x128xf32>
    %22 = math.absf %21 : vector<512x128xf32>
    %23 = arith.mulf %22, %15 : vector<512x128xf32>
    %cst_5 = arith.constant 0.000000e+00 : f32
    %24 = vector.broadcast %cst_5 : f32 to vector<512x128xf32>
    %25 = arith.select %20, %23, %24 : vector<512x128xi1>, vector<512x128xf32>
    %cst_6 = arith.constant 0.000000e+00 : f32
    %26 = vector.broadcast %cst_6 : f32 to vector<512x128xf32>
    %27 = arith.select %20, %15, %26 : vector<512x128xi1>, vector<512x128xf32>
    %28 = vector.shape_cast %25 : vector<512x128xf32> to vector<64x8x128xf32>
    %cst_7 = arith.constant dense<0.000000e+00> : vector<8x128xf32>
    %29 = vector.multi_reduction <add>, %28, %cst_7 [0] : vector<64x8x128xf32> to vector<8x128xf32>
    %30 = arith.addf %7, %29 : vector<8x128xf32>
    %31 = vector.shape_cast %27 : vector<512x128xf32> to vector<64x8x128xf32>
    %cst_8 = arith.constant dense<0.000000e+00> : vector<8x128xf32>
    %32 = vector.multi_reduction <add>, %31, %cst_8 [0] : vector<64x8x128xf32> to vector<8x128xf32>
    %33 = arith.addf %7, %32 : vector<8x128xf32>
    %c1_i32_9 = arith.constant 1 : i32
    %c0_10 = arith.constant 0 : index
    %c0_11 = arith.constant 0 : index
    %34 = vector.load %arg7[%c0_10, %c0_11] : memref<8x128xf32, #tpu.memory_space<vmem>>, vector<8x128xf32>
    %35 = arith.addf %34, %30 : vector<8x128xf32>
    %c0_12 = arith.constant 0 : index
    %c0_13 = arith.constant 0 : index
    %36 = vector.load %arg7[%c0_12, %c0_13] : memref<8x128xf32, #tpu.memory_space<vmem>>, vector<8x128xf32>
    tpu.vector_store %arg7[%c0_12, %c0_13], %35 {strides = array<i32>} : memref<8x128xf32, #tpu.memory_space<vmem>>, vector<8x128xf32>,
    %c0_14 = arith.constant 0 : index
    %c0_15 = arith.constant 0 : index
    %37 = vector.load %arg8[%c0_14, %c0_15] : memref<8x128xf32, #tpu.memory_space<vmem>>, vector<8x128xf32>
    %38 = arith.addf %37, %33 : vector<8x128xf32>
    %c0_16 = arith.constant 0 : index
    %c0_17 = arith.constant 0 : index
    %39 = vector.load %arg8[%c0_16, %c0_17] : memref<8x128xf32, #tpu.memory_space<vmem>>, vector<8x128xf32>
    tpu.vector_store %arg8[%c0_16, %c0_17], %38 {strides = array<i32>} : memref<8x128xf32, #tpu.memory_space<vmem>>, vector<8x128xf32>,
    %c0_i32_18 = arith.constant 0 : i32
    %40 = arith.cmpi eq, %arg1, %c0_i32_18 : i32
    %41 = arith.extui %40 : i1 to i32
    %c0_i32_19 = arith.constant 0 : i32
    %42 = arith.cmpi ne, %41, %c0_i32_19 : i32
    scf.if %42 {
      %c0_20 = arith.constant 0 : index
      %c0_21 = arith.constant 0 : index
      %43 = vector.load %arg7[%c0_20, %c0_21] : memref<8x128xf32, #tpu.memory_space<vmem>>, vector<8x128xf32>
      %44 = vector.shape_cast %43 : vector<8x128xf32> to vector<1x8x128xf32>
      %c0_22 = arith.constant 0 : index
      %c0_23 = arith.constant 0 : index
      %c0_24 = arith.constant 0 : index
      %45 = vector.load %arg5[%c0_22, %c0_23, %c0_24] : memref<1x8x128xf32, #tpu.memory_space<vmem>>, vector<1x8x128xf32>
      tpu.vector_store %arg5[%c0_22, %c0_23, %c0_24], %44 {strides = array<i32>} : memref<1x8x128xf32, #tpu.memory_space<vmem>>, vector<1x8x128xf32>,
      %c0_25 = arith.constant 0 : index
      %c0_26 = arith.constant 0 : index
      %46 = vector.load %arg8[%c0_25, %c0_26] : memref<8x128xf32, #tpu.memory_space<vmem>>, vector<8x128xf32>
      %47 = vector.shape_cast %46 : vector<8x128xf32> to vector<1x8x128xf32>
      %c0_27 = arith.constant 0 : index
      %c0_28 = arith.constant 0 : index
      %c0_29 = arith.constant 0 : index
      %48 = vector.load %arg6[%c0_27, %c0_28, %c0_29] : memref<1x8x128xf32, #tpu.memory_space<vmem>>, vector<1x8x128xf32>
      tpu.vector_store %arg6[%c0_27, %c0_28, %c0_29], %47 {strides = array<i32>} : memref<1x8x128xf32, #tpu.memory_space<vmem>>, vector<1x8x128xf32>,
    } else {
    }
    return
  }
  func.func @transform_0(%arg0: i32, %arg1: i32) -> (i32, i32) {
    %c1_i32 = arith.constant 1 : i32
    %0 = arith.muli %arg0, %c1_i32 : i32
    %1 = arith.addi %0, %arg1 : i32
    %c0_i32 = arith.constant 0 : i32
    %c0_i32_0 = arith.constant 0 : i32
    return %1, %c0_i32 : i32, i32
  }
  func.func @transform_1(%arg0: i32, %arg1: i32) -> (i32, i32) {
    %c1_i32 = arith.constant 1 : i32
    %0 = arith.muli %arg0, %c1_i32 : i32
    %1 = arith.addi %0, %arg1 : i32
    %c0_i32 = arith.constant 0 : i32
    %c0_i32_0 = arith.constant 0 : i32
    return %1, %c0_i32 : i32, i32
  }
  func.func @transform_2(%arg0: i32, %arg1: i32) -> (i32, i32) {
    %c1_i32 = arith.constant 1 : i32
    %0 = arith.muli %arg0, %c1_i32 : i32
    %1 = arith.addi %0, %arg1 : i32
    %c0_i32 = arith.constant 0 : i32
    %c0_i32_0 = arith.constant 0 : i32
    return %1, %c0_i32 : i32, i32
  }
  func.func @transform_3(%arg0: i32, %arg1: i32) -> (i32, i32, i32) {
    %c0_i32 = arith.constant 0 : i32
    %c0_i32_0 = arith.constant 0 : i32
    %c0_i32_1 = arith.constant 0 : i32
    return %arg0, %c0_i32, %c0_i32_0 : i32, i32, i32
  }
  func.func @transform_4(%arg0: i32, %arg1: i32) -> (i32, i32, i32) {
    %c0_i32 = arith.constant 0 : i32
    %c0_i32_0 = arith.constant 0 : i32
    %c0_i32_1 = arith.constant 0 : i32
    return %arg0, %c0_i32, %c0_i32_0 : i32, i32, i32
  }
}

</mosaic_0001>

<llo_original>
// kernel: tpu_custom_call.1
$region0: #{tpu_custom_call.1}
  #allocation0 [shape = 'u32[]', space=smem, size = 0x4, offset = 0x4, fixed_abs, tag = 'smem constant byte address 0x4 - core index']
  #allocation1 [shape = 'u32[144,128]{1,0:T(1,128)}', space=vmem, size = 0x12000, scoped, tag = 'internal scratch']
  #allocation2 [shape = 'f32[8,128]{1,0:T(8,128)}', space=vmem, size = 0x1000, scoped, tag = 'scratch operand']
  #allocation3 [shape = 'f32[8,128]{1,0:T(8,128)}', space=vmem, size = 0x1000, scoped, tag = 'scratch operand']
  %s0 = inlined_call_operand.hbm [shape: f32[16,128], index: 0, kind: input, shape index: {}]
  %s1 = inlined_call_operand.hbm [shape: f32[16,128], index: 1, kind: input, shape index: {}]
  %s2 = inlined_call_operand.hbm [shape: f32[16,128], index: 2, kind: input, shape index: {}]
  %s3 = inlined_call_operand.hbm [shape: f32[1,8,128], index: 3, kind: output, shape index: {0}]
  %s4 = inlined_call_operand.hbm [shape: f32[1,8,128], index: 4, kind: output, shape index: {1}]
  %5 = xla_tuple %s3, %s4
  %s6 = sld [smem:[#allocation0]]
  $region50: #{tpu_custom_call.1} parent=0
    _
  %s8 = ssub.s32 1, %s6
  %s9 = scalar_select 0, %s8, %s6
  $region1: #{tpu_custom_call.1} parent=0
    #allocation4 [shape = 'u8[262144]{0}', space=vmem, size = 0x40000, scoped, tag = 'input window, operand 0, single buffered']
    #allocation5 [shape = 's32[1]{0}', space=sflag, size = 0x4, scoped, tag = 'scoped memory for tpu_custom_call.1']
    #allocation6 [shape = 's32[1]{0}', space=sflag, size = 0x4, scoped, tag = 'scoped memory for tpu_custom_call.1']
    #allocation7 [shape = 'u8[262144]{0}', space=vmem, size = 0x40000, scoped, tag = 'input window, operand 1, single buffered']
    #allocation8 [shape = 's32[1]{0}', space=sflag, size = 0x4, scoped, tag = 'scoped memory for tpu_custom_call.1']
    #allocation9 [shape = 'u8[262144]{0}', space=vmem, size = 0x40000, scoped, tag = 'input window, operand 2, single buffered']
    #allocation10 [shape = 'u8[4096]{0}', space=vmem, size = 0x1000, scoped, tag = 'output window, operand 0, single buffered']
    #allocation11 [shape = 'u8[4096]{0}', space=vmem, size = 0x1000, scoped, tag = 'output window, operand 1, single buffered']
    #allocation12 [shape = 's32[1]{0}', space=sflag, size = 0x4, scoped, tag = 'scoped memory for tpu_custom_call.1']
    %10 = vsyncpa [#allocation5], 0
    %11 = vsyncpa [#allocation8], 0
    %12 = vsyncpa [#allocation6], 0
    %13 = vsyncpa [#allocation12], 0
    // Predicated region
    $region2: #{tpu_custom_call.1} parent=1 // pred_check
      _
    $region3: #{tpu_custom_call.1} parent=1 // pred_check_branch
      %15 = sbr.rel (0) target = $region5
    $region4: #{tpu_custom_call.1} parent=1 // pred_region
      %s16 = sadd.s32 0, 0
      %s17 = smul.u32 64, %s16
      %s18 = ssub.s32 2, %s17
      %s19 = smul.u32 128, %s18
      %s21 = ssub.s32 8192, %s19
      %22 = vsyncadd [#allocation5], %s21
      %p23 = scmp.ne.s32.totalorder 0, %s19
      %s24 = smul.addr %s17, 128
      %s25 = scalar_lea.hbm %s0, %s24
      %s26 = smul.u32 8, %s18
      %s27 = sshll.u32 [#allocation4], 4
      %s28 = int_to_ptr.vmem [resolvable:$true] %s27
      %s29 = sshll.u32 %s26, 4
      %33 = dma.hbm_to_vmem [thread:$0]  (%p23), %s25, %s29, %s28, [#allocation5], 128, 128, 8
    $region5: #{tpu_custom_call.1} parent=1 // pred_fallthru
      _
    // Predicated region
    $region6: #{tpu_custom_call.1} parent=1 // pred_check
      _
    $region7: #{tpu_custom_call.1} parent=1 // pred_check_branch
      %35 = sbr.rel (0) target = $region9
    $region8: #{tpu_custom_call.1} parent=1 // pred_region
      %s36 = sadd.s32 0, 0
      %s37 = smul.u32 64, %s36
      %s38 = ssub.s32 2, %s37
      %s39 = smul.u32 128, %s38
      %s41 = ssub.s32 8192, %s39
      %42 = vsyncadd [#allocation8], %s41
      %p43 = scmp.ne.s32.totalorder 0, %s39
      %s44 = smul.addr %s37, 128
      %s45 = scalar_lea.hbm %s1, %s44
      %s46 = smul.u32 8, %s38
      %s47 = sshll.u32 [#allocation7], 4
      %s48 = int_to_ptr.vmem [resolvable:$true] %s47
      %s49 = sshll.u32 %s46, 4
      %53 = dma.hbm_to_vmem [thread:$0]  (%p43), %s45, %s49, %s48, [#allocation8], 128, 128, 8
    $region9: #{tpu_custom_call.1} parent=1 // pred_fallthru
      _
    // Predicated region
    $region10: #{tpu_custom_call.1} parent=1 // pred_check
      _
    $region11: #{tpu_custom_call.1} parent=1 // pred_check_branch
      %55 = sbr.rel (0) target = $region13
    $region12: #{tpu_custom_call.1} parent=1 // pred_region
      %s56 = sadd.s32 0, 0
      %s57 = smul.u32 64, %s56
      %s58 = ssub.s32 2, %s57
      %s59 = smul.u32 128, %s58
      %s61 = ssub.s32 8192, %s59
      %62 = vsyncadd [#allocation8], %s61
      %p63 = scmp.ne.s32.totalorder 0, %s59
      %s64 = smul.addr %s57, 128
      %s65 = scalar_lea.hbm %s2, %s64
      %s66 = smul.u32 8, %s58
      %s67 = sshll.u32 [#allocation9], 4
      %s68 = int_to_ptr.vmem [resolvable:$true] %s67
      %s69 = sshll.u32 %s66, 4
      %73 = dma.hbm_to_vmem [thread:$0]  (%p63), %s65, %s69, %s68, [#allocation8], 128, 128, 8
    $region13: #{tpu_custom_call.1} parent=1 // pred_fallthru
      _
    // Predicated region
    $region14: #{tpu_custom_call.1} parent=1 // pred_check
      _
    $region15: #{tpu_custom_call.1} parent=1 // pred_check_branch
      %75 = sbr.rel (0) target = $region17
    $region16: #{tpu_custom_call.1} parent=1 // pred_region
      %76 = dma.done [#allocation5], 8192
    $region17: #{tpu_custom_call.1} parent=1 // pred_fallthru
      _
    // Predicated region
    $region18: #{tpu_custom_call.1} parent=1 // pred_check
      _
    $region19: #{tpu_custom_call.1} parent=1 // pred_check_branch
      %78 = sbr.rel (0) target = $region21
    $region20: #{tpu_custom_call.1} parent=1 // pred_region
      %79 = dma.done [#allocation8], 8192
    $region21: #{tpu_custom_call.1} parent=1 // pred_fallthru
      _
    // Predicated region
    $region22: #{tpu_custom_call.1} parent=1 // pred_check
      _
    $region23: #{tpu_custom_call.1} parent=1 // pred_check_branch
      %81 = sbr.rel (0) target = $region25
    $region24: #{tpu_custom_call.1} parent=1 // pred_region
      %82 = dma.done [#allocation8], 8192
    $region25: #{tpu_custom_call.1} parent=1 // pred_fallthru
      _
    %s83 = sadd.s32 0, 0
    %s84 = smul.u32 64, %s83
    %s85 = ssub.s32 2, %s84
    %s86 = smul.u32 128, %s85
    %s87 = sadd.s32 0, 0
    %s88 = smul.u32 64, %s87
    %s89 = ssub.s32 2, %s88
    %s90 = smul.u32 128, %s89
    %s91 = sadd.s32 0, 0
    %s92 = smul.u32 64, %s91
    %s93 = ssub.s32 2, %s92
    %s94 = smul.u32 128, %s93
    %p95 = scmp.eq.s32.totalorder 0, 0
    // Predicated region
    $region26: #{tpu_custom_call.1} parent=1 // pred_check
      %p96 = pneg %p95
    $region27: #{tpu_custom_call.1} parent=1 // pred_check_branch
      %98 = sbr.rel (%p96) target = $region29
    $region28: #{tpu_custom_call.1} parent=1 // pred_region
      %99 = vst [vmem:[#allocation2] sm:$0xff] 0.0
      %100 = vst [vmem:[#allocation3] sm:$0xff] 0.0
    $region29: #{tpu_custom_call.1} parent=1 // pred_fallthru
      _
    %s101 = sadd.s32 0, 0
    %s102 = smul.u32 %s101, 512
    %v103 = vlaneseq
    %v104 = vshrl.u32 %v103, 7
    %v105 = vadd.s32 %v104, 8
    %v106 = vadd.s32 %v104, 16
    %v107 = vadd.s32 %v104, 24
    %v108 = vadd.s32 %v104, 32
    %v109 = vadd.s32 %v104, 40
    %v110 = vadd.s32 %v104, 48
    %v111 = vadd.s32 %v104, 56
    %v112 = vadd.s32 %v104, 64
    %v113 = vadd.s32 %v104, 72
    %v114 = vadd.s32 %v104, 80
    %v115 = vadd.s32 %v104, 88
    %v116 = vadd.s32 %v104, 96
    %v117 = vadd.s32 %v104, 104
    %v118 = vadd.s32 %v104, 112
    %v119 = vadd.s32 %v104, 120
    %v120 = vadd.s32 %v104, 128
    %v121 = vadd.s32 %v104, 136
    %v122 = vadd.s32 %v104, 144
    %v123 = vadd.s32 %v104, 152
    %v124 = vadd.s32 %v104, 160
    %v125 = vadd.s32 %v104, 168
    %v126 = vadd.s32 %v104, 176
    %v127 = vadd.s32 %v104, 184
    %v128 = vadd.s32 %v104, 192
    %v129 = vadd.s32 %v104, 200
    %v130 = vadd.s32 %v104, 208
    %v131 = vadd.s32 %v104, 216
    %v132 = vadd.s32 %v104, 224
    %v133 = vadd.s32 %v104, 232
    %v134 = vadd.s32 %v104, 240
    %v135 = vadd.s32 %v104, 248
    %v136 = vadd.s32 %v104, 256
    %v137 = vadd.s32 %v104, 264
    %v138 = vadd.s32 %v104, 272
    %v139 = vadd.s32 %v104, 280
    %v140 = vadd.s32 %v104, 288
    %v141 = vadd.s32 %v104, 296
    %v142 = vadd.s32 %v104, 304
    %v143 = vadd.s32 %v104, 312
    %v144 = vadd.s32 %v104, 320
    %v145 = vadd.s32 %v104, 328
    %v146 = vadd.s32 %v104, 336
    %v147 = vadd.s32 %v104, 344
    %v148 = vadd.s32 %v104, 352
    %v149 = vadd.s32 %v104, 360
    %v150 = vadd.s32 %v104, 368
    %v151 = vadd.s32 %v104, 376
    %v152 = vadd.s32 %v104, 384
    %v153 = vadd.s32 %v104, 392
    %v154 = vadd.s32 %v104, 400
    %v155 = vadd.s32 %v104, 408
    %v156 = vadd.s32 %v104, 416
    %v157 = vadd.s32 %v104, 424
    %v158 = vadd.s32 %v104, 432
    %v159 = vadd.s32 %v104, 440
    %v160 = vadd.s32 %v104, 448
    %v161 = vadd.s32 %v104, 456
    %v162 = vadd.s32 %v104, 464
    %v163 = vadd.s32 %v104, 472
    %v164 = vadd.s32 %v104, 480
    %v165 = vadd.s32 %v104, 488
    %v166 = vadd.s32 %v104, 496
    %v167 = vadd.s32 %v104, 504
    %v168 = vld [vmem:[#allocation4] sm:$0xff]
    %v169 = vld [vmem:[#allocation4 + $0x8] sm:$0xff]
    %v170 = vld [vmem:[#allocation4 + $0x10] sm:$0xff]
    %v171 = vld [vmem:[#allocation4 + $0x18] sm:$0xff]
    %v172 = vld [vmem:[#allocation4 + $0x20] sm:$0xff]
    %v173 = vld [vmem:[#allocation4 + $0x28] sm:$0xff]
    %v174 = vld [vmem:[#allocation4 + $0x30] sm:$0xff]
    %v175 = vld [vmem:[#allocation4 + $0x38] sm:$0xff]
    %v176 = vld [vmem:[#allocation4 + $0x40] sm:$0xff]
    %v177 = vld [vmem:[#allocation4 + $0x48] sm:$0xff]
    %v178 = vld [vmem:[#allocation4 + $0x50] sm:$0xff]
    %v179 = vld [vmem:[#allocation4 + $0x58] sm:$0xff]
    %v180 = vld [vmem:[#allocation4 + $0x60] sm:$0xff]
    %v181 = vld [vmem:[#allocation4 + $0x68] sm:$0xff]
    %v182 = vld [vmem:[#allocation4 + $0x70] sm:$0xff]
    %v183 = vld [vmem:[#allocation4 + $0x78] sm:$0xff]
    %v184 = vld [vmem:[#allocation4 + $0x80] sm:$0xff]
    %v185 = vld [vmem:[#allocation4 + $0x88] sm:$0xff]
    %v186 = vld [vmem:[#allocation4 + $0x90] sm:$0xff]
    %v187 = vld [vmem:[#allocation4 + $0x98] sm:$0xff]
    %v188 = vld [vmem:[#allocation4 + $0xa0] sm:$0xff]
    %v189 = vld [vmem:[#allocation4 + $0xa8] sm:$0xff]
    %v190 = vld [vmem:[#allocation4 + $0xb0] sm:$0xff]
    %v191 = vld [vmem:[#allocation4 + $0xb8] sm:$0xff]
    %v192 = vld [vmem:[#allocation4 + $0xc0] sm:$0xff]
    %v193 = vld [vmem:[#allocation4 + $0xc8] sm:$0xff]
    %v194 = vld [vmem:[#allocation4 + $0xd0] sm:$0xff]
    %v195 = vld [vmem:[#allocation4 + $0xd8] sm:$0xff]
    %v196 = vld [vmem:[#allocation4 + $0xe0] sm:$0xff]
    %v197 = vld [vmem:[#allocation4 + $0xe8] sm:$0xff]
    %v198 = vld [vmem:[#allocation4 + $0xf0] sm:$0xff]
    %v199 = vld [vmem:[#allocation4 + $0xf8] sm:$0xff]
    %v200 = vld [vmem:[#allocation4 + $0x100] sm:$0xff]
    %v201 = vld [vmem:[#allocation4 + $0x108] sm:$0xff]
    %v202 = vld [vmem:[#allocation4 + $0x110] sm:$0xff]
    %v203 = vld [vmem:[#allocation4 + $0x118] sm:$0xff]
    %v204 = vld [vmem:[#allocation4 + $0x120] sm:$0xff]
    %v205 = vld [vmem:[#allocation4 + $0x128] sm:$0xff]
    %v206 = vld [vmem:[#allocation4 + $0x130] sm:$0xff]
    %v207 = vld [vmem:[#allocation4 + $0x138] sm:$0xff]
    %v208 = vld [vmem:[#allocation4 + $0x140] sm:$0xff]
    %v209 = vld [vmem:[#allocation4 + $0x148] sm:$0xff]
    %v210 = vld [vmem:[#allocation4 + $0x150] sm:$0xff]
    %v211 = vld [vmem:[#allocation4 + $0x158] sm:$0xff]
    %v212 = vld [vmem:[#allocation4 + $0x160] sm:$0xff]
    %v213 = vld [vmem:[#allocation4 + $0x168] sm:$0xff]
    %v214 = vld [vmem:[#allocation4 + $0x170] sm:$0xff]
    %v215 = vld [vmem:[#allocation4 + $0x178] sm:$0xff]
    %v216 = vld [vmem:[#allocation4 + $0x180] sm:$0xff]
    %v217 = vld [vmem:[#allocation4 + $0x188] sm:$0xff]
    %v218 = vld [vmem:[#allocation4 + $0x190] sm:$0xff]
    %v219 = vld [vmem:[#allocation4 + $0x198] sm:$0xff]
    %v220 = vld [vmem:[#allocation4 + $0x1a0] sm:$0xff]
    %v221 = vld [vmem:[#allocation4 + $0x1a8] sm:$0xff]
    %v222 = vld [vmem:[#allocation4 + $0x1b0] sm:$0xff]
    %v223 = vld [vmem:[#allocation4 + $0x1b8] sm:$0xff]
    %v224 = vld [vmem:[#allocation4 + $0x1c0] sm:$0xff]
    %v225 = vld [vmem:[#allocation4 + $0x1c8] sm:$0xff]
    %v226 = vld [vmem:[#allocation4 + $0x1d0] sm:$0xff]
    %v227 = vld [vmem:[#allocation4 + $0x1d8] sm:$0xff]
    %v228 = vld [vmem:[#allocation4 + $0x1e0] sm:$0xff]
    %v229 = vld [vmem:[#allocation4 + $0x1e8] sm:$0xff]
    %v230 = vld [vmem:[#allocation4 + $0x1f0] sm:$0xff]
    %v231 = vld [vmem:[#allocation4 + $0x1f8] sm:$0xff]
    %v232 = vld [vmem:[#allocation7] sm:$0xff]
    %v233 = vld [vmem:[#allocation7 + $0x8] sm:$0xff]
    %v234 = vld [vmem:[#allocation7 + $0x10] sm:$0xff]
    %v235 = vld [vmem:[#allocation7 + $0x18] sm:$0xff]
    %v236 = vld [vmem:[#allocation7 + $0x20] sm:$0xff]
    %v237 = vld [vmem:[#allocation7 + $0x28] sm:$0xff]
    %v238 = vld [vmem:[#allocation7 + $0x30] sm:$0xff]
    %v239 = vld [vmem:[#allocation7 + $0x38] sm:$0xff]
    %v240 = vld [vmem:[#allocation7 + $0x40] sm:$0xff]
    %v241 = vld [vmem:[#allocation7 + $0x48] sm:$0xff]
    %v242 = vld [vmem:[#allocation7 + $0x50] sm:$0xff]
    %v243 = vld [vmem:[#allocation7 + $0x58] sm:$0xff]
    %v244 = vld [vmem:[#allocation7 + $0x60] sm:$0xff]
    %v245 = vld [vmem:[#allocation7 + $0x68] sm:$0xff]
    %v246 = vld [vmem:[#allocation7 + $0x70] sm:$0xff]
    %v247 = vld [vmem:[#allocation7 + $0x78] sm:$0xff]
    %v248 = vld [vmem:[#allocation7 + $0x80] sm:$0xff]
    %v249 = vld [vmem:[#allocation7 + $0x88] sm:$0xff]
    %v250 = vld [vmem:[#allocation7 + $0x90] sm:$0xff]
    %v251 = vld [vmem:[#allocation7 + $0x98] sm:$0xff]
    %v252 = vld [vmem:[#allocation7 + $0xa0] sm:$0xff]
    %v253 = vld [vmem:[#allocation7 + $0xa8] sm:$0xff]
    %v254 = vld [vmem:[#allocation7 + $0xb0] sm:$0xff]
    %v255 = vld [vmem:[#allocation7 + $0xb8] sm:$0xff]
    %v256 = vld [vmem:[#allocation7 + $0xc0] sm:$0xff]
    %v257 = vld [vmem:[#allocation7 + $0xc8] sm:$0xff]
    %v258 = vld [vmem:[#allocation7 + $0xd0] sm:$0xff]
    %v259 = vld [vmem:[#allocation7 + $0xd8] sm:$0xff]
    %v260 = vld [vmem:[#allocation7 + $0xe0] sm:$0xff]
    %v261 = vld [vmem:[#allocation7 + $0xe8] sm:$0xff]
    %v262 = vld [vmem:[#allocation7 + $0xf0] sm:$0xff]
    %v263 = vld [vmem:[#allocation7 + $0xf8] sm:$0xff]
    %v264 = vld [vmem:[#allocation7 + $0x100] sm:$0xff]
    %v265 = vld [vmem:[#allocation7 + $0x108] sm:$0xff]
    %v266 = vld [vmem:[#allocation7 + $0x110] sm:$0xff]
    %v267 = vld [vmem:[#allocation7 + $0x118] sm:$0xff]
    %v268 = vld [vmem:[#allocation7 + $0x120] sm:$0xff]
    %v269 = vld [vmem:[#allocation7 + $0x128] sm:$0xff]
    %v270 = vld [vmem:[#allocation7 + $0x130] sm:$0xff]
    %v271 = vld [vmem:[#allocation7 + $0x138] sm:$0xff]
    %v272 = vld [vmem:[#allocation7 + $0x140] sm:$0xff]
    %v273 = vld [vmem:[#allocation7 + $0x148] sm:$0xff]
    %v274 = vld [vmem:[#allocation7 + $0x150] sm:$0xff]
    %v275 = vld [vmem:[#allocation7 + $0x158] sm:$0xff]
    %v276 = vld [vmem:[#allocation7 + $0x160] sm:$0xff]
    %v277 = vld [vmem:[#allocation7 + $0x168] sm:$0xff]
    %v278 = vld [vmem:[#allocation7 + $0x170] sm:$0xff]
    %v279 = vld [vmem:[#allocation7 + $0x178] sm:$0xff]
    %v280 = vld [vmem:[#allocation7 + $0x180] sm:$0xff]
    %v281 = vld [vmem:[#allocation7 + $0x188] sm:$0xff]
    %v282 = vld [vmem:[#allocation7 + $0x190] sm:$0xff]
    %v283 = vld [vmem:[#allocation7 + $0x198] sm:$0xff]
    %v284 = vld [vmem:[#allocation7 + $0x1a0] sm:$0xff]
    %v285 = vld [vmem:[#allocation7 + $0x1a8] sm:$0xff]
    %v286 = vld [vmem:[#allocation7 + $0x1b0] sm:$0xff]
    %v287 = vld [vmem:[#allocation7 + $0x1b8] sm:$0xff]
    %v288 = vld [vmem:[#allocation7 + $0x1c0] sm:$0xff]
    %v289 = vld [vmem:[#allocation7 + $0x1c8] sm:$0xff]
    %v290 = vld [vmem:[#allocation7 + $0x1d0] sm:$0xff]
    %v291 = vld [vmem:[#allocation7 + $0x1d8] sm:$0xff]
    %v292 = vld [vmem:[#allocation7 + $0x1e0] sm:$0xff]
    %v293 = vld [vmem:[#allocation7 + $0x1e8] sm:$0xff]
    %v294 = vld [vmem:[#allocation7 + $0x1f0] sm:$0xff]
    %v295 = vld [vmem:[#allocation7 + $0x1f8] sm:$0xff]
    %v296 = vld [vmem:[#allocation9] sm:$0xff]
    %v297 = vld [vmem:[#allocation9 + $0x8] sm:$0xff]
    %v298 = vld [vmem:[#allocation9 + $0x10] sm:$0xff]
    %v299 = vld [vmem:[#allocation9 + $0x18] sm:$0xff]
    %v300 = vld [vmem:[#allocation9 + $0x20] sm:$0xff]
    %v301 = vld [vmem:[#allocation9 + $0x28] sm:$0xff]
    %v302 = vld [vmem:[#allocation9 + $0x30] sm:$0xff]
    %v303 = vld [vmem:[#allocation9 + $0x38] sm:$0xff]
    %v304 = vld [vmem:[#allocation9 + $0x40] sm:$0xff]
    %v305 = vld [vmem:[#allocation9 + $0x48] sm:$0xff]
    %v306 = vld [vmem:[#allocation9 + $0x50] sm:$0xff]
    %v307 = vld [vmem:[#allocation9 + $0x58] sm:$0xff]
    %v308 = vld [vmem:[#allocation9 + $0x60] sm:$0xff]
    %v309 = vld [vmem:[#allocation9 + $0x68] sm:$0xff]
    %v310 = vld [vmem:[#allocation9 + $0x70] sm:$0xff]
    %v311 = vld [vmem:[#allocation9 + $0x78] sm:$0xff]
    %v312 = vld [vmem:[#allocation9 + $0x80] sm:$0xff]
    %v313 = vld [vmem:[#allocation9 + $0x88] sm:$0xff]
    %v314 = vld [vmem:[#allocation9 + $0x90] sm:$0xff]
    %v315 = vld [vmem:[#allocation9 + $0x98] sm:$0xff]
    %v316 = vld [vmem:[#allocation9 + $0xa0] sm:$0xff]
    %v317 = vld [vmem:[#allocation9 + $0xa8] sm:$0xff]
    %v318 = vld [vmem:[#allocation9 + $0xb0] sm:$0xff]
    %v319 = vld [vmem:[#allocation9 + $0xb8] sm:$0xff]
    %v320 = vld [vmem:[#allocation9 + $0xc0] sm:$0xff]
    %v321 = vld [vmem:[#allocation9 + $0xc8] sm:$0xff]
    %v322 = vld [vmem:[#allocation9 + $0xd0] sm:$0xff]
    %v323 = vld [vmem:[#allocation9 + $0xd8] sm:$0xff]
    %v324 = vld [vmem:[#allocation9 + $0xe0] sm:$0xff]
    %v325 = vld [vmem:[#allocation9 + $0xe8] sm:$0xff]
    %v326 = vld [vmem:[#allocation9 + $0xf0] sm:$0xff]
    %v327 = vld [vmem:[#allocation9 + $0xf8] sm:$0xff]
    %v328 = vld [vmem:[#allocation9 + $0x100] sm:$0xff]
    %v329 = vld [vmem:[#allocation9 + $0x108] sm:$0xff]
    %v330 = vld [vmem:[#allocation9 + $0x110] sm:$0xff]
    %v331 = vld [vmem:[#allocation9 + $0x118] sm:$0xff]
    %v332 = vld [vmem:[#allocation9 + $0x120] sm:$0xff]
    %v333 = vld [vmem:[#allocation9 + $0x128] sm:$0xff]
    %v334 = vld [vmem:[#allocation9 + $0x130] sm:$0xff]
    %v335 = vld [vmem:[#allocation9 + $0x138] sm:$0xff]
    %v336 = vld [vmem:[#allocation9 + $0x140] sm:$0xff]
    %v337 = vld [vmem:[#allocation9 + $0x148] sm:$0xff]
    %v338 = vld [vmem:[#allocation9 + $0x150] sm:$0xff]
    %v339 = vld [vmem:[#allocation9 + $0x158] sm:$0xff]
    %v340 = vld [vmem:[#allocation9 + $0x160] sm:$0xff]
    %v341 = vld [vmem:[#allocation9 + $0x168] sm:$0xff]
    %v342 = vld [vmem:[#allocation9 + $0x170] sm:$0xff]
    %v343 = vld [vmem:[#allocation9 + $0x178] sm:$0xff]
    %v344 = vld [vmem:[#allocation9 + $0x180] sm:$0xff]
    %v345 = vld [vmem:[#allocation9 + $0x188] sm:$0xff]
    %v346 = vld [vmem:[#allocation9 + $0x190] sm:$0xff]
    %v347 = vld [vmem:[#allocation9 + $0x198] sm:$0xff]
    %v348 = vld [vmem:[#allocation9 + $0x1a0] sm:$0xff]
    %v349 = vld [vmem:[#allocation9 + $0x1a8] sm:$0xff]
    %v350 = vld [vmem:[#allocation9 + $0x1b0] sm:$0xff]
    %v351 = vld [vmem:[#allocation9 + $0x1b8] sm:$0xff]
    %v352 = vld [vmem:[#allocation9 + $0x1c0] sm:$0xff]
    %v353 = vld [vmem:[#allocation9 + $0x1c8] sm:$0xff]
    %v354 = vld [vmem:[#allocation9 + $0x1d0] sm:$0xff]
    %v355 = vld [vmem:[#allocation9 + $0x1d8] sm:$0xff]
    %v356 = vld [vmem:[#allocation9 + $0x1e0] sm:$0xff]
    %v357 = vld [vmem:[#allocation9 + $0x1e8] sm:$0xff]
    %v358 = vld [vmem:[#allocation9 + $0x1f0] sm:$0xff]
    %v359 = vld [vmem:[#allocation9 + $0x1f8] sm:$0xff]
    %s360 = sadd.s32 %s102, 0
    %v361 = vstv %s360
    %v362 = vadd.s32 %v361, %v104
    %v363 = vadd.s32 %v361, %v105
    %v364 = vadd.s32 %v361, %v106
    %v365 = vadd.s32 %v361, %v107
    %v366 = vadd.s32 %v361, %v108
    %v367 = vadd.s32 %v361, %v109
    %v368 = vadd.s32 %v361, %v110
    %v369 = vadd.s32 %v361, %v111
    %v370 = vadd.s32 %v361, %v112
    %v371 = vadd.s32 %v361, %v113
    %v372 = vadd.s32 %v361, %v114
    %v373 = vadd.s32 %v361, %v115
    %v374 = vadd.s32 %v361, %v116
    %v375 = vadd.s32 %v361, %v117
    %v376 = vadd.s32 %v361, %v118
    %v377 = vadd.s32 %v361, %v119
    %v378 = vadd.s32 %v361, %v120
    %v379 = vadd.s32 %v361, %v121
    %v380 = vadd.s32 %v361, %v122
    %v381 = vadd.s32 %v361, %v123
    %v382 = vadd.s32 %v361, %v124
    %v383 = vadd.s32 %v361, %v125
    %v384 = vadd.s32 %v361, %v126
    %v385 = vadd.s32 %v361, %v127
    %v386 = vadd.s32 %v361, %v128
    %v387 = vadd.s32 %v361, %v129
    %v388 = vadd.s32 %v361, %v130
    %v389 = vadd.s32 %v361, %v131
    %v390 = vadd.s32 %v361, %v132
    %v391 = vadd.s32 %v361, %v133
    %v392 = vadd.s32 %v361, %v134
    %v393 = vadd.s32 %v361, %v135
    %v394 = vadd.s32 %v361, %v136
    %v395 = vadd.s32 %v361, %v137
    %v396 = vadd.s32 %v361, %v138
    %v397 = vadd.s32 %v361, %v139
    %v398 = vadd.s32 %v361, %v140
    %v399 = vadd.s32 %v361, %v141
    %v400 = vadd.s32 %v361, %v142
    %v401 = vadd.s32 %v361, %v143
    %v402 = vadd.s32 %v361, %v144
    %v403 = vadd.s32 %v361, %v145
    %v404 = vadd.s32 %v361, %v146
    %v405 = vadd.s32 %v361, %v147
    %v406 = vadd.s32 %v361, %v148
    %v407 = vadd.s32 %v361, %v149
    %v408 = vadd.s32 %v361, %v150
    %v409 = vadd.s32 %v361, %v151
    %v410 = vadd.s32 %v361, %v152
    %v411 = vadd.s32 %v361, %v153
    %v412 = vadd.s32 %v361, %v154
    %v413 = vadd.s32 %v361, %v155
    %v414 = vadd.s32 %v361, %v156
    %v415 = vadd.s32 %v361, %v157
    %v416 = vadd.s32 %v361, %v158
    %v417 = vadd.s32 %v361, %v159
    %v418 = vadd.s32 %v361, %v160
    %v419 = vadd.s32 %v361, %v161
    %v420 = vadd.s32 %v361, %v162
    %v421 = vadd.s32 %v361, %v163
    %v422 = vadd.s32 %v361, %v164
    %v423 = vadd.s32 %v361, %v165
    %v424 = vadd.s32 %v361, %v166
    %v425 = vadd.s32 %v361, %v167
    %vm426 = vcmp.lt.s32.totalorder %v362, 16
    %vm427 = vcmp.lt.s32.totalorder %v363, 16
    %vm428 = vcmp.lt.s32.totalorder %v364, 16
    %vm429 = vcmp.lt.s32.totalorder %v365, 16
    %vm430 = vcmp.lt.s32.totalorder %v366, 16
    %vm431 = vcmp.lt.s32.totalorder %v367, 16
    %vm432 = vcmp.lt.s32.totalorder %v368, 16
    %vm433 = vcmp.lt.s32.totalorder %v369, 16
    %vm434 = vcmp.lt.s32.totalorder %v370, 16
    %vm435 = vcmp.lt.s32.totalorder %v371, 16
    %vm436 = vcmp.lt.s32.totalorder %v372, 16
    %vm437 = vcmp.lt.s32.totalorder %v373, 16
    %vm438 = vcmp.lt.s32.totalorder %v374, 16
    %vm439 = vcmp.lt.s32.totalorder %v375, 16
    %vm440 = vcmp.lt.s32.totalorder %v376, 16
    %vm441 = vcmp.lt.s32.totalorder %v377, 16
    %vm442 = vcmp.lt.s32.totalorder %v378, 16
    %vm443 = vcmp.lt.s32.totalorder %v379, 16
    %vm444 = vcmp.lt.s32.totalorder %v380, 16
    %vm445 = vcmp.lt.s32.totalorder %v381, 16
    %vm446 = vcmp.lt.s32.totalorder %v382, 16
    %vm447 = vcmp.lt.s32.totalorder %v383, 16
    %vm448 = vcmp.lt.s32.totalorder %v384, 16
    %vm449 = vcmp.lt.s32.totalorder %v385, 16
    %vm450 = vcmp.lt.s32.totalorder %v386, 16
    %vm451 = vcmp.lt.s32.totalorder %v387, 16
    %vm452 = vcmp.lt.s32.totalorder %v388, 16
    %vm453 = vcmp.lt.s32.totalorder %v389, 16
    %vm454 = vcmp.lt.s32.totalorder %v390, 16
    %vm455 = vcmp.lt.s32.totalorder %v391, 16
    %vm456 = vcmp.lt.s32.totalorder %v392, 16
    %vm457 = vcmp.lt.s32.totalorder %v393, 16
    %vm458 = vcmp.lt.s32.totalorder %v394, 16
    %vm459 = vcmp.lt.s32.totalorder %v395, 16
    %vm460 = vcmp.lt.s32.totalorder %v396, 16
    %vm461 = vcmp.lt.s32.totalorder %v397, 16
    %vm462 = vcmp.lt.s32.totalorder %v398, 16
    %vm463 = vcmp.lt.s32.totalorder %v399, 16
    %vm464 = vcmp.lt.s32.totalorder %v400, 16
    %vm465 = vcmp.lt.s32.totalorder %v401, 16
    %vm466 = vcmp.lt.s32.totalorder %v402, 16
    %vm467 = vcmp.lt.s32.totalorder %v403, 16
    %vm468 = vcmp.lt.s32.totalorder %v404, 16
    %vm469 = vcmp.lt.s32.totalorder %v405, 16
    %vm470 = vcmp.lt.s32.totalorder %v406, 16
    %vm471 = vcmp.lt.s32.totalorder %v407, 16
    %vm472 = vcmp.lt.s32.totalorder %v408, 16
    %vm473 = vcmp.lt.s32.totalorder %v409, 16
    %vm474 = vcmp.lt.s32.totalorder %v410, 16
    %vm475 = vcmp.lt.s32.totalorder %v411, 16
    %vm476 = vcmp.lt.s32.totalorder %v412, 16
    %vm477 = vcmp.lt.s32.totalorder %v413, 16
    %vm478 = vcmp.lt.s32.totalorder %v414, 16
    %vm479 = vcmp.lt.s32.totalorder %v415, 16
    %vm480 = vcmp.lt.s32.totalorder %v416, 16
    %vm481 = vcmp.lt.s32.totalorder %v417, 16
    %vm482 = vcmp.lt.s32.totalorder %v418, 16
    %vm483 = vcmp.lt.s32.totalorder %v419, 16
    %vm484 = vcmp.lt.s32.totalorder %v420, 16
    %vm485 = vcmp.lt.s32.totalorder %v421, 16
    %vm486 = vcmp.lt.s32.totalorder %v422, 16
    %vm487 = vcmp.lt.s32.totalorder %v423, 16
    %vm488 = vcmp.lt.s32.totalorder %v424, 16
    %vm489 = vcmp.lt.s32.totalorder %v425, 16
    %v490 = vsub.f32 %v168, %v232
    %v491 = vsub.f32 %v169, %v233
    %v492 = vsub.f32 %v170, %v234
    %v493 = vsub.f32 %v171, %v235
    %v494 = vsub.f32 %v172, %v236
    %v495 = vsub.f32 %v173, %v237
    %v496 = vsub.f32 %v174, %v238
    %v497 = vsub.f32 %v175, %v239
    %v498 = vsub.f32 %v176, %v240
    %v499 = vsub.f32 %v177, %v241
    %v500 = vsub.f32 %v178, %v242
    %v501 = vsub.f32 %v179, %v243
    %v502 = vsub.f32 %v180, %v244
    %v503 = vsub.f32 %v181, %v245
    %v504 = vsub.f32 %v182, %v246
    %v505 = vsub.f32 %v183, %v247
    %v506 = vsub.f32 %v184, %v248
    %v507 = vsub.f32 %v185, %v249
    %v508 = vsub.f32 %v186, %v250
    %v509 = vsub.f32 %v187, %v251
    %v510 = vsub.f32 %v188, %v252
    %v511 = vsub.f32 %v189, %v253
    %v512 = vsub.f32 %v190, %v254
    %v513 = vsub.f32 %v191, %v255
    %v514 = vsub.f32 %v192, %v256
    %v515 = vsub.f32 %v193, %v257
    %v516 = vsub.f32 %v194, %v258
    %v517 = vsub.f32 %v195, %v259
    %v518 = vsub.f32 %v196, %v260
    %v519 = vsub.f32 %v197, %v261
    %v520 = vsub.f32 %v198, %v262
    %v521 = vsub.f32 %v199, %v263
    %v522 = vsub.f32 %v200, %v264
    %v523 = vsub.f32 %v201, %v265
    %v524 = vsub.f32 %v202, %v266
    %v525 = vsub.f32 %v203, %v267
    %v526 = vsub.f32 %v204, %v268
    %v527 = vsub.f32 %v205, %v269
    %v528 = vsub.f32 %v206, %v270
    %v529 = vsub.f32 %v207, %v271
    %v530 = vsub.f32 %v208, %v272
    %v531 = vsub.f32 %v209, %v273
    %v532 = vsub.f32 %v210, %v274
    %v533 = vsub.f32 %v211, %v275
    %v534 = vsub.f32 %v212, %v276
    %v535 = vsub.f32 %v213, %v277
    %v536 = vsub.f32 %v214, %v278
    %v537 = vsub.f32 %v215, %v279
    %v538 = vsub.f32 %v216, %v280
    %v539 = vsub.f32 %v217, %v281
    %v540 = vsub.f32 %v218, %v282
    %v541 = vsub.f32 %v219, %v283
    %v542 = vsub.f32 %v220, %v284
    %v543 = vsub.f32 %v221, %v285
    %v544 = vsub.f32 %v222, %v286
    %v545 = vsub.f32 %v223, %v287
    %v546 = vsub.f32 %v224, %v288
    %v547 = vsub.f32 %v225, %v289
    %v548 = vsub.f32 %v226, %v290
    %v549 = vsub.f32 %v227, %v291
    %v550 = vsub.f32 %v228, %v292
    %v551 = vsub.f32 %v229, %v293
    %v552 = vsub.f32 %v230, %v294
    %v553 = vsub.f32 %v231, %v295
    %v554 = vand.u32 2147483647, %v490
    %v555 = vand.u32 2147483647, %v491
    %v556 = vand.u32 2147483647, %v492
    %v557 = vand.u32 2147483647, %v493
    %v558 = vand.u32 2147483647, %v494
    %v559 = vand.u32 2147483647, %v495
    %v560 = vand.u32 2147483647, %v496
    %v561 = vand.u32 2147483647, %v497
    %v562 = vand.u32 2147483647, %v498
    %v563 = vand.u32 2147483647, %v499
    %v564 = vand.u32 2147483647, %v500
    %v565 = vand.u32 2147483647, %v501
    %v566 = vand.u32 2147483647, %v502
    %v567 = vand.u32 2147483647, %v503
    %v568 = vand.u32 2147483647, %v504
    %v569 = vand.u32 2147483647, %v505
    %v570 = vand.u32 2147483647, %v506
    %v571 = vand.u32 2147483647, %v507
    %v572 = vand.u32 2147483647, %v508
    %v573 = vand.u32 2147483647, %v509
    %v574 = vand.u32 2147483647, %v510
    %v575 = vand.u32 2147483647, %v511
    %v576 = vand.u32 2147483647, %v512
    %v577 = vand.u32 2147483647, %v513
    %v578 = vand.u32 2147483647, %v514
    %v579 = vand.u32 2147483647, %v515
    %v580 = vand.u32 2147483647, %v516
    %v581 = vand.u32 2147483647, %v517
    %v582 = vand.u32 2147483647, %v518
    %v583 = vand.u32 2147483647, %v519
    %v584 = vand.u32 2147483647, %v520
    %v585 = vand.u32 2147483647, %v521
    %v586 = vand.u32 2147483647, %v522
    %v587 = vand.u32 2147483647, %v523
    %v588 = vand.u32 2147483647, %v524
    %v589 = vand.u32 2147483647, %v525
    %v590 = vand.u32 2147483647, %v526
    %v591 = vand.u32 2147483647, %v527
    %v592 = vand.u32 2147483647, %v528
    %v593 = vand.u32 2147483647, %v529
    %v594 = vand.u32 2147483647, %v530
    %v595 = vand.u32 2147483647, %v531
    %v596 = vand.u32 2147483647, %v532
    %v597 = vand.u32 2147483647, %v533
    %v598 = vand.u32 2147483647, %v534
    %v599 = vand.u32 2147483647, %v535
    %v600 = vand.u32 2147483647, %v536
    %v601 = vand.u32 2147483647, %v537
    %v602 = vand.u32 2147483647, %v538
    %v603 = vand.u32 2147483647, %v539
    %v604 = vand.u32 2147483647, %v540
    %v605 = vand.u32 2147483647, %v541
    %v606 = vand.u32 2147483647, %v542
    %v607 = vand.u32 2147483647, %v543
    %v608 = vand.u32 2147483647, %v544
    %v609 = vand.u32 2147483647, %v545
    %v610 = vand.u32 2147483647, %v546
    %v611 = vand.u32 2147483647, %v547
    %v612 = vand.u32 2147483647, %v548
    %v613 = vand.u32 2147483647, %v549
    %v614 = vand.u32 2147483647, %v550
    %v615 = vand.u32 2147483647, %v551
    %v616 = vand.u32 2147483647, %v552
    %v617 = vand.u32 2147483647, %v553
    %v618 = vmul.f32 %v554, %v296
    %v619 = vmul.f32 %v555, %v297
    %v620 = vmul.f32 %v556, %v298
    %v621 = vmul.f32 %v557, %v299
    %v622 = vmul.f32 %v558, %v300
    %v623 = vmul.f32 %v559, %v301
    %v624 = vmul.f32 %v560, %v302
    %v625 = vmul.f32 %v561, %v303
    %v626 = vmul.f32 %v562, %v304
    %v627 = vmul.f32 %v563, %v305
    %v628 = vmul.f32 %v564, %v306
    %v629 = vmul.f32 %v565, %v307
    %v630 = vmul.f32 %v566, %v308
    %v631 = vmul.f32 %v567, %v309
    %v632 = vmul.f32 %v568, %v310
    %v633 = vmul.f32 %v569, %v311
    %v634 = vmul.f32 %v570, %v312
    %v635 = vmul.f32 %v571, %v313
    %v636 = vmul.f32 %v572, %v314
    %v637 = vmul.f32 %v573, %v315
    %v638 = vmul.f32 %v574, %v316
    %v639 = vmul.f32 %v575, %v317
    %v640 = vmul.f32 %v576, %v318
    %v641 = vmul.f32 %v577, %v319
    %v642 = vmul.f32 %v578, %v320
    %v643 = vmul.f32 %v579, %v321
    %v644 = vmul.f32 %v580, %v322
    %v645 = vmul.f32 %v581, %v323
    %v646 = vmul.f32 %v582, %v324
    %v647 = vmul.f32 %v583, %v325
    %v648 = vmul.f32 %v584, %v326
    %v649 = vmul.f32 %v585, %v327
    %v650 = vmul.f32 %v586, %v328
    %v651 = vmul.f32 %v587, %v329
    %v652 = vmul.f32 %v588, %v330
    %v653 = vmul.f32 %v589, %v331
    %v654 = vmul.f32 %v590, %v332
    %v655 = vmul.f32 %v591, %v333
    %v656 = vmul.f32 %v592, %v334
    %v657 = vmul.f32 %v593, %v335
    %v658 = vmul.f32 %v594, %v336
    %v659 = vmul.f32 %v595, %v337
    %v660 = vmul.f32 %v596, %v338
    %v661 = vmul.f32 %v597, %v339
    %v662 = vmul.f32 %v598, %v340
    %v663 = vmul.f32 %v599, %v341
    %v664 = vmul.f32 %v600, %v342
    %v665 = vmul.f32 %v601, %v343
    %v666 = vmul.f32 %v602, %v344
    %v667 = vmul.f32 %v603, %v345
    %v668 = vmul.f32 %v604, %v346
    %v669 = vmul.f32 %v605, %v347
    %v670 = vmul.f32 %v606, %v348
    %v671 = vmul.f32 %v607, %v349
    %v672 = vmul.f32 %v608, %v350
    %v673 = vmul.f32 %v609, %v351
    %v674 = vmul.f32 %v610, %v352
    %v675 = vmul.f32 %v611, %v353
    %v676 = vmul.f32 %v612, %v354
    %v677 = vmul.f32 %v613, %v355
    %v678 = vmul.f32 %v614, %v356
    %v679 = vmul.f32 %v615, %v357
    %v680 = vmul.f32 %v616, %v358
    %v681 = vmul.f32 %v617, %v359
    %v682 = vsel %vm426, %v618, 0.0
    %v683 = vsel %vm427, %v619, 0.0
    %v684 = vsel %vm428, %v620, 0.0
    %v685 = vsel %vm429, %v621, 0.0
    %v686 = vsel %vm430, %v622, 0.0
    %v687 = vsel %vm431, %v623, 0.0
    %v688 = vsel %vm432, %v624, 0.0
    %v689 = vsel %vm433, %v625, 0.0
    %v690 = vsel %vm434, %v626, 0.0
    %v691 = vsel %vm435, %v627, 0.0
    %v692 = vsel %vm436, %v628, 0.0
    %v693 = vsel %vm437, %v629, 0.0
    %v694 = vsel %vm438, %v630, 0.0
    %v695 = vsel %vm439, %v631, 0.0
    %v696 = vsel %vm440, %v632, 0.0
    %v697 = vsel %vm441, %v633, 0.0
    %v698 = vsel %vm442, %v634, 0.0
    %v699 = vsel %vm443, %v635, 0.0
    %v700 = vsel %vm444, %v636, 0.0
    %v701 = vsel %vm445, %v637, 0.0
    %v702 = vsel %vm446, %v638, 0.0
    %v703 = vsel %vm447, %v639, 0.0
    %v704 = vsel %vm448, %v640, 0.0
    %v705 = vsel %vm449, %v641, 0.0
    %v706 = vsel %vm450, %v642, 0.0
    %v707 = vsel %vm451, %v643, 0.0
    %v708 = vsel %vm452, %v644, 0.0
    %v709 = vsel %vm453, %v645, 0.0
    %v710 = vsel %vm454, %v646, 0.0
    %v711 = vsel %vm455, %v647, 0.0
    %v712 = vsel %vm456, %v648, 0.0
    %v713 = vsel %vm457, %v649, 0.0
    %v714 = vsel %vm458, %v650, 0.0
    %v715 = vsel %vm459, %v651, 0.0
    %v716 = vsel %vm460, %v652, 0.0
    %v717 = vsel %vm461, %v653, 0.0
    %v718 = vsel %vm462, %v654, 0.0
    %v719 = vsel %vm463, %v655, 0.0
    %v720 = vsel %vm464, %v656, 0.0
    %v721 = vsel %vm465, %v657, 0.0
    %v722 = vsel %vm466, %v658, 0.0
    %v723 = vsel %vm467, %v659, 0.0
    %v724 = vsel %vm468, %v660, 0.0
    %v725 = vsel %vm469, %v661, 0.0
    %v726 = vsel %vm470, %v662, 0.0
    %v727 = vsel %vm471, %v663, 0.0
    %v728 = vsel %vm472, %v664, 0.0
    %v729 = vsel %vm473, %v665, 0.0
    %v730 = vsel %vm474, %v666, 0.0
    %v731 = vsel %vm475, %v667, 0.0
    %v732 = vsel %vm476, %v668, 0.0
    %v733 = vsel %vm477, %v669, 0.0
    %v734 = vsel %vm478, %v670, 0.0
    %v735 = vsel %vm479, %v671, 0.0
    %v736 = vsel %vm480, %v672, 0.0
    %v737 = vsel %vm481, %v673, 0.0
    %v738 = vsel %vm482, %v674, 0.0
    %v739 = vsel %vm483, %v675, 0.0
    %v740 = vsel %vm484, %v676, 0.0
    %v741 = vsel %vm485, %v677, 0.0
    %v742 = vsel %vm486, %v678, 0.0
    %v743 = vsel %vm487, %v679, 0.0
    %v744 = vsel %vm488, %v680, 0.0
    %v745 = vsel %vm489, %v681, 0.0
    %v746 = vsel %vm426, %v296, 0.0
    %v747 = vsel %vm427, %v297, 0.0
    %v748 = vsel %vm428, %v298, 0.0
    %v749 = vsel %vm429, %v299, 0.0
    %v750 = vsel %vm430, %v300, 0.0
    %v751 = vsel %vm431, %v301, 0.0
    %v752 = vsel %vm432, %v302, 0.0
    %v753 = vsel %vm433, %v303, 0.0
    %v754 = vsel %vm434, %v304, 0.0
    %v755 = vsel %vm435, %v305, 0.0
    %v756 = vsel %vm436, %v306, 0.0
    %v757 = vsel %vm437, %v307, 0.0
    %v758 = vsel %vm438, %v308, 0.0
    %v759 = vsel %vm439, %v309, 0.0
    %v760 = vsel %vm440, %v310, 0.0
    %v761 = vsel %vm441, %v311, 0.0
    %v762 = vsel %vm442, %v312, 0.0
    %v763 = vsel %vm443, %v313, 0.0
    %v764 = vsel %vm444, %v314, 0.0
    %v765 = vsel %vm445, %v315, 0.0
    %v766 = vsel %vm446, %v316, 0.0
    %v767 = vsel %vm447, %v317, 0.0
    %v768 = vsel %vm448, %v318, 0.0
    %v769 = vsel %vm449, %v319, 0.0
    %v770 = vsel %vm450, %v320, 0.0
    %v771 = vsel %vm451, %v321, 0.0
    %v772 = vsel %vm452, %v322, 0.0
    %v773 = vsel %vm453, %v323, 0.0
    %v774 = vsel %vm454, %v324, 0.0
    %v775 = vsel %vm455, %v325, 0.0
    %v776 = vsel %vm456, %v326, 0.0
    %v777 = vsel %vm457, %v327, 0.0
    %v778 = vsel %vm458, %v328, 0.0
    %v779 = vsel %vm459, %v329, 0.0
    %v780 = vsel %vm460, %v330, 0.0
    %v781 = vsel %vm461, %v331, 0.0
    %v782 = vsel %vm462, %v332, 0.0
    %v783 = vsel %vm463, %v333, 0.0
    %v784 = vsel %vm464, %v334, 0.0
    %v785 = vsel %vm465, %v335, 0.0
    %v786 = vsel %vm466, %v336, 0.0
    %v787 = vsel %vm467, %v337, 0.0
    %v788 = vsel %vm468, %v338, 0.0
    %v789 = vsel %vm469, %v339, 0.0
    %v790 = vsel %vm470, %v340, 0.0
    %v791 = vsel %vm471, %v341, 0.0
    %v792 = vsel %vm472, %v342, 0.0
    %v793 = vsel %vm473, %v343, 0.0
    %v794 = vsel %vm474, %v344, 0.0
    %v795 = vsel %vm475, %v345, 0.0
    %v796 = vsel %vm476, %v346, 0.0
    %v797 = vsel %vm477, %v347, 0.0
    %v798 = vsel %vm478, %v348, 0.0
    %v799 = vsel %vm479, %v349, 0.0
    %v800 = vsel %vm480, %v350, 0.0
    %v801 = vsel %vm481, %v351, 0.0
    %v802 = vsel %vm482, %v352, 0.0
    %v803 = vsel %vm483, %v353, 0.0
    %v804 = vsel %vm484, %v354, 0.0
    %v805 = vsel %vm485, %v355, 0.0
    %v806 = vsel %vm486, %v356, 0.0
    %v807 = vsel %vm487, %v357, 0.0
    %v808 = vsel %vm488, %v358, 0.0
    %v809 = vsel %vm489, %v359, 0.0
    %v810 = vadd.f32 %v682, %v683
    %v811 = vadd.f32 %v810, %v684
    %v812 = vadd.f32 %v811, %v685
    %v813 = vadd.f32 %v812, %v686
    %v814 = vadd.f32 %v813, %v687
    %v815 = vadd.f32 %v814, %v688
    %v816 = vadd.f32 %v815, %v689
    %v817 = vadd.f32 %v816, %v690
    %v818 = vadd.f32 %v817, %v691
    %v819 = vadd.f32 %v818, %v692
    %v820 = vadd.f32 %v819, %v693
    %v821 = vadd.f32 %v820, %v694
    %v822 = vadd.f32 %v821, %v695
    %v823 = vadd.f32 %v822, %v696
    %v824 = vadd.f32 %v823, %v697
    %v825 = vadd.f32 %v824, %v698
    %v826 = vadd.f32 %v825, %v699
    %v827 = vadd.f32 %v826, %v700
    %v828 = vadd.f32 %v827, %v701
    %v829 = vadd.f32 %v828, %v702
    %v830 = vadd.f32 %v829, %v703
    %v831 = vadd.f32 %v830, %v704
    %v832 = vadd.f32 %v831, %v705
    %v833 = vadd.f32 %v832, %v706
    %v834 = vadd.f32 %v833, %v707
    %v835 = vadd.f32 %v834, %v708
    %v836 = vadd.f32 %v835, %v709
    %v837 = vadd.f32 %v836, %v710
    %v838 = vadd.f32 %v837, %v711
    %v839 = vadd.f32 %v838, %v712
    %v840 = vadd.f32 %v839, %v713
    %v841 = vadd.f32 %v840, %v714
    %v842 = vadd.f32 %v841, %v715
    %v843 = vadd.f32 %v842, %v716
    %v844 = vadd.f32 %v843, %v717
    %v845 = vadd.f32 %v844, %v718
    %v846 = vadd.f32 %v845, %v719
    %v847 = vadd.f32 %v846, %v720
    %v848 = vadd.f32 %v847, %v721
    %v849 = vadd.f32 %v848, %v722
    %v850 = vadd.f32 %v849, %v723
    %v851 = vadd.f32 %v850, %v724
    %v852 = vadd.f32 %v851, %v725
    %v853 = vadd.f32 %v852, %v726
    %v854 = vadd.f32 %v853, %v727
    %v855 = vadd.f32 %v854, %v728
    %v856 = vadd.f32 %v855, %v729
    %v857 = vadd.f32 %v856, %v730
    %v858 = vadd.f32 %v857, %v731
    %v859 = vadd.f32 %v858, %v732
    %v860 = vadd.f32 %v859, %v733
    %v861 = vadd.f32 %v860, %v734
    %v862 = vadd.f32 %v861, %v735
    %v863 = vadd.f32 %v862, %v736
    %v864 = vadd.f32 %v863, %v737
    %v865 = vadd.f32 %v864, %v738
    %v866 = vadd.f32 %v865, %v739
    %v867 = vadd.f32 %v866, %v740
    %v868 = vadd.f32 %v867, %v741
    %v869 = vadd.f32 %v868, %v742
    %v870 = vadd.f32 %v869, %v743
    %v871 = vadd.f32 %v870, %v744
    %v872 = vadd.f32 %v871, %v745
    %v873 = vadd.f32 %v872, 0.0
    %v874 = vadd.f32 %v746, %v747
    %v875 = vadd.f32 %v874, %v748
    %v876 = vadd.f32 %v875, %v749
    %v877 = vadd.f32 %v876, %v750
    %v878 = vadd.f32 %v877, %v751
    %v879 = vadd.f32 %v878, %v752
    %v880 = vadd.f32 %v879, %v753
    %v881 = vadd.f32 %v880, %v754
    %v882 = vadd.f32 %v881, %v755
    %v883 = vadd.f32 %v882, %v756
    %v884 = vadd.f32 %v883, %v757
    %v885 = vadd.f32 %v884, %v758
    %v886 = vadd.f32 %v885, %v759
    %v887 = vadd.f32 %v886, %v760
    %v888 = vadd.f32 %v887, %v761
    %v889 = vadd.f32 %v888, %v762
    %v890 = vadd.f32 %v889, %v763
    %v891 = vadd.f32 %v890, %v764
    %v892 = vadd.f32 %v891, %v765
    %v893 = vadd.f32 %v892, %v766
    %v894 = vadd.f32 %v893, %v767
    %v895 = vadd.f32 %v894, %v768
    %v896 = vadd.f32 %v895, %v769
    %v897 = vadd.f32 %v896, %v770
    %v898 = vadd.f32 %v897, %v771
    %v899 = vadd.f32 %v898, %v772
    %v900 = vadd.f32 %v899, %v773
    %v901 = vadd.f32 %v900, %v774
    %v902 = vadd.f32 %v901, %v775
    %v903 = vadd.f32 %v902, %v776
    %v904 = vadd.f32 %v903, %v777
    %v905 = vadd.f32 %v904, %v778
    %v906 = vadd.f32 %v905, %v779
    %v907 = vadd.f32 %v906, %v780
    %v908 = vadd.f32 %v907, %v781
    %v909 = vadd.f32 %v908, %v782
    %v910 = vadd.f32 %v909, %v783
    %v911 = vadd.f32 %v910, %v784
    %v912 = vadd.f32 %v911, %v785
    %v913 = vadd.f32 %v912, %v786
    %v914 = vadd.f32 %v913, %v787
    %v915 = vadd.f32 %v914, %v788
    %v916 = vadd.f32 %v915, %v789
    %v917 = vadd.f32 %v916, %v790
    %v918 = vadd.f32 %v917, %v791
    %v919 = vadd.f32 %v918, %v792
    %v920 = vadd.f32 %v919, %v793
    %v921 = vadd.f32 %v920, %v794
    %v922 = vadd.f32 %v921, %v795
    %v923 = vadd.f32 %v922, %v796
    %v924 = vadd.f32 %v923, %v797
    %v925 = vadd.f32 %v924, %v798
    %v926 = vadd.f32 %v925, %v799
    %v927 = vadd.f32 %v926, %v800
    %v928 = vadd.f32 %v927, %v801
    %v929 = vadd.f32 %v928, %v802
    %v930 = vadd.f32 %v929, %v803
    %v931 = vadd.f32 %v930, %v804
    %v932 = vadd.f32 %v931, %v805
    %v933 = vadd.f32 %v932, %v806
    %v934 = vadd.f32 %v933, %v807
    %v935 = vadd.f32 %v934, %v808
    %v936 = vadd.f32 %v935, %v809
    %v937 = vadd.f32 %v936, 0.0
    %v938 = vld [vmem:[#allocation2] sm:$0xff]
    %v939 = vadd.f32 %v938, %v873
    %940 = vst [vmem:[#allocation2] sm:$0xff] %v939
    %v941 = vld [vmem:[#allocation3] sm:$0xff]
    %v942 = vadd.f32 %v941, %v937
    %943 = vst [vmem:[#allocation3] sm:$0xff] %v942
    // Predicated region
    $region30: #{tpu_custom_call.1} parent=1 // pred_check
      %p944 = pneg %p95
    $region31: #{tpu_custom_call.1} parent=1 // pred_check_branch
      %946 = sbr.rel (%p944) target = $region33
    $region32: #{tpu_custom_call.1} parent=1 // pred_region
      %v947 = vld [vmem:[#allocation2] sm:$0xff]
      %948 = vst [vmem:[#allocation10] sm:$0xff] %v947
      %v949 = vld [vmem:[#allocation3] sm:$0xff]
      %950 = vst [vmem:[#allocation11] sm:$0xff] %v949
    $region33: #{tpu_custom_call.1} parent=1 // pred_fallthru
      _
    // Predicated region
    $region34: #{tpu_custom_call.1} parent=1 // pred_check
      _
    $region35: #{tpu_custom_call.1} parent=1 // pred_check_branch
      %952 = sbr.rel (0) target = $region37
    $region36: #{tpu_custom_call.1} parent=1 // pred_region
      %s954 = ssub.s32 128, 128
      %955 = vsyncadd [#allocation6], %s954
      %s957 = sshll.u32 [#allocation10], 4
      %s958 = int_to_ptr.vmem [resolvable:$true] %s957
      %960 = dma.vmem_to_hbm [thread:$0]  %s958, 128, %s3, [#allocation6]
    $region37: #{tpu_custom_call.1} parent=1 // pred_fallthru
      _
    // Predicated region
    $region38: #{tpu_custom_call.1} parent=1 // pred_check
      _
    $region39: #{tpu_custom_call.1} parent=1 // pred_check_branch
      %962 = sbr.rel (0) target = $region41
    $region40: #{tpu_custom_call.1} parent=1 // pred_region
      %s964 = ssub.s32 128, 128
      %965 = vsyncadd [#allocation12], %s964
      %s967 = sshll.u32 [#allocation11], 4
      %s968 = int_to_ptr.vmem [resolvable:$true] %s967
      %970 = dma.vmem_to_hbm [thread:$0]  %s968, 128, %s4, [#allocation12]
    $region41: #{tpu_custom_call.1} parent=1 // pred_fallthru
      _
    // Predicated region
    $region42: #{tpu_custom_call.1} parent=1 // pred_check
      _
    $region43: #{tpu_custom_call.1} parent=1 // pred_check_branch
      %972 = sbr.rel (0) target = $region45
    $region44: #{tpu_custom_call.1} parent=1 // pred_region
      %973 = dma.done [#allocation6], 128
    $region45: #{tpu_custom_call.1} parent=1 // pred_fallthru
      _
    // Predicated region
    $region46: #{tpu_custom_call.1} parent=1 // pred_check
      _
    $region47: #{tpu_custom_call.1} parent=1 // pred_check_branch
      %975 = sbr.rel (0) target = $region49
    $region48: #{tpu_custom_call.1} parent=1 // pred_region
      %976 = dma.done [#allocation12], 128
    $region49: #{tpu_custom_call.1} parent=1 // pred_fallthru
      _
    %977 = vsyncpa [#allocation5], 1
    %978 = vsyncpa [#allocation8], 1
    %979 = vsyncpa [#allocation6], 1
    %980 = vsyncpa [#allocation12], 1

</llo_original>
